<compile_context>
chip_gen: v7x
topology: tpu7x:2x2x1
jax: 0.10.0
libtpu: 0.0.40
codegen_flags: <defaults>
</compile_context>

<pallas_src>
import functools

import jax
import jax.numpy as jnp
from jax.experimental import pallas as pl
from jax.experimental.pallas import tpu as pltpu


LANE = 128            # TPU lane width
SINGLE_STEP_MAX = 512  # batches up to this size run in one grid step
MAX_TILE_B = 1024      # cap on rows per grid step for large batches


def _round_up(x, m):
    return (x + m - 1) // m * m


def _choose_tile_b(batch):
    """Pick the batch-tile size.

    <= SINGLE_STEP_MAX rows: one grid step (per-step overhead dominates tiny
    tiles).  Larger: at least 2 grid steps so the 'parallel' axis shards
    across both v7x TensorCores, tile capped at MAX_TILE_B rows.
    """
    if batch <= SINGLE_STEP_MAX:
        return max(8, _round_up(batch, 8))
    half = (batch + 1) // 2
    return min(MAX_TILE_B, _round_up(half, LANE))


def generator_kernel(
    noise_ref,
    w1_ref, b1_ref,
    w2_ref, b2_ref,
    w3_ref, b3_ref,
    wh_ref, bh_ref,      # fused (fingerprint || features) head, zero-padded to lane width
    out_ref,             # (tile_b, head_padded) fused tanh output slab (f32)
):
    # bf16 operands -> native MXU rate; f32 accumulation via preferred_element_type.
    x = noise_ref[...].astype(jnp.bfloat16)

    # input_layer: Linear + ReLU (+ Dropout -> identity at inference)
    h = jnp.dot(x, w1_ref[...], preferred_element_type=jnp.float32) + b1_ref[...]
    h = jnp.maximum(h, 0.0)

    # hidden_layer: two (Linear + ReLU + Dropout) blocks
    h = jnp.dot(h.astype(jnp.bfloat16), w2_ref[...],
                preferred_element_type=jnp.float32) + b2_ref[...]
    h = jnp.maximum(h, 0.0)

    h = jnp.dot(h.astype(jnp.bfloat16), w3_ref[...],
                preferred_element_type=jnp.float32) + b3_ref[...]
    h = jnp.maximum(h, 0.0)

    # fused output heads: one matmul, one bias add, one tanh, lane-dense store
    y = jnp.dot(h.astype(jnp.bfloat16), wh_ref[...],
                preferred_element_type=jnp.float32) + bh_ref[...]
    out_ref[...] = jnp.tanh(y)


def prepare_params(params, *, fingerprint_dim, feature_dim):
    """One-time param prep: fuse + lane-pad the two heads, cast weights to bf16.

    Keeps the per-call forward free of concat/pad/cast work and the
    pallas_call operand layout stable.
    """
    head_dim = fingerprint_dim + feature_dim
    head_padded = _round_up(head_dim, LANE)
    wh = jnp.concatenate([params["wfp"], params["wft"]], axis=1)
    bh = jnp.concatenate([params["bfp"], params["bft"]], axis=1)
    wh = jnp.pad(wh, ((0, 0), (0, head_padded - head_dim)))
    bh = jnp.pad(bh, ((0, 0), (0, head_padded - head_dim)))
    return {
        "w1": params["w1"].astype(jnp.bfloat16), "b1": params["b1"],
        "w2": params["w2"].astype(jnp.bfloat16), "b2": params["b2"],
        "w3": params["w3"].astype(jnp.bfloat16), "b3": params["b3"],
        "wh": wh.astype(jnp.bfloat16), "bh": bh,
    }


@functools.partial(jax.jit, static_argnames=("fingerprint_dim", "feature_dim"))
def generator_forward(noise, prep, *, fingerprint_dim, feature_dim):
    """noise: (B, noise_dim) float32. prep: output of prepare_params().
    Returns dict with 'fingerprint', 'features' (float32)."""
    B, noise_dim = noise.shape
    hidden_dim = prep["w1"].shape[1]
    head_padded = prep["wh"].shape[1]

    # ---- Batch tiling: big tiles, >=2 grid steps only when batch is large. ----
    tile_b = _choose_tile_b(B)
    B_pad = _round_up(B, tile_b)
    noise_p = jnp.pad(noise, ((0, B_pad - B), (0, 0))) if B_pad != B else noise
    grid = (B_pad // tile_b,)

    args = (
        noise_p,
        prep["w1"], prep["b1"],
        prep["w2"], prep["b2"],
        prep["w3"], prep["b3"],
        prep["wh"], prep["bh"],
    )

    def resident(shape):
        # weights / biases: whole array, constant index_map -> resident in VMEM
        # across all grid steps; single-buffered (no double-buffer copy needed).
        return pl.BlockSpec(shape, lambda i: (0, 0), pipeline_mode=pl.Buffered(1))

    in_specs = [
        pl.BlockSpec((tile_b, noise_dim), lambda i: (i, 0)),           # noise, batch-tiled
        resident((noise_dim, hidden_dim)), resident((1, hidden_dim)),  # w1, b1
        resident((hidden_dim, hidden_dim)), resident((1, hidden_dim)),  # w2, b2
        resident((hidden_dim, hidden_dim)), resident((1, hidden_dim)),  # w3, b3
        resident((hidden_dim, head_padded)), resident((1, head_padded)),  # fused head
    ]
    out_specs = pl.BlockSpec((tile_b, head_padded), lambda i: (i, 0))

    flops = 2 * B_pad * (
        noise_dim * hidden_dim
        + 2 * hidden_dim * hidden_dim
        + hidden_dim * head_padded
    )
    bytes_accessed = (
        4 * (B_pad * noise_dim + B_pad * head_padded          # f32 activations in/out
             + 3 * hidden_dim + head_padded)                  # f32 biases
        + 2 * (noise_dim * hidden_dim + 2 * hidden_dim * hidden_dim
               + hidden_dim * head_padded)                    # bf16 weights
    )
    cost = pl.CostEstimate(
        flops=flops,
        transcendentals=B_pad * head_padded,
        bytes_accessed=bytes_accessed,
    )

    fused = pl.pallas_call(
        generator_kernel,
        grid=grid,
        out_shape=jax.ShapeDtypeStruct((B_pad, head_padded), jnp.float32),
        in_specs=in_specs,
        out_specs=out_specs,
        compiler_params=pltpu.CompilerParams(
            dimension_semantics=("parallel",),
        ),
        cost_estimate=cost,
    )(*args)

    fused = fused[:B]
    return {
        "fingerprint": fused[:, :fingerprint_dim],
        "features": fused[:, fingerprint_dim:fingerprint_dim + feature_dim],
    }


def init_params(key, noise_dim, fingerprint_dim, feature_dim, hidden_dim):
    """PyTorch-Linear-style init: U(-1/sqrt(fan_in), 1/sqrt(fan_in)).
    Weights stored as (in_dim, out_dim); biases as (1, out_dim). All float32."""
    def linear(key, fan_in, fan_out):
        kw, kb = jax.random.split(key)
        bound = 1.0 / jnp.sqrt(float(fan_in))
        w = jax.random.uniform(kw, (fan_in, fan_out), jnp.float32, -bound, bound)
        b = jax.random.uniform(kb, (1, fan_out), jnp.float32, -bound, bound)
        return w, b

    keys = jax.random.split(key, 5)
    w1, b1 = linear(keys[0], noise_dim, hidden_dim)
    w2, b2 = linear(keys[1], hidden_dim, hidden_dim)
    w3, b3 = linear(keys[2], hidden_dim, hidden_dim)
    wfp, bfp = linear(keys[3], hidden_dim, fingerprint_dim)
    wft, bft = linear(keys[4], hidden_dim, feature_dim)
    return {
        "w1": w1, "b1": b1,
        "w2": w2, "b2": b2,
        "w3": w3, "b3": b3,
        "wfp": wfp, "bfp": bfp,
        "wft": wft, "bft": bft,
    }


def reference_forward(noise, params):
    """Pure-JAX f32 reference for correctness checking."""
    h = jnp.maximum(noise @ params["w1"] + params["b1"], 0.0)
    h = jnp.maximum(h @ params["w2"] + params["b2"], 0.0)
    h = jnp.maximum(h @ params["w3"] + params["b3"], 0.0)
    fp = jnp.tanh(h @ params["wfp"] + params["bfp"])
    ft = jnp.tanh(h @ params["wft"] + params["bft"])
    return {"fingerprint": fp, "features": ft}


if __name__ == "__main__":
    # Shapes consistent with the module (hidden_dim default 128). Two batch
    # sizes exercise both paths: single-step grid (<=512 rows, with row
    # padding) and the 2-step "parallel" grid used for larger batches.
    noise_dim = 16
    fingerprint_dim = 128   # Morgan fingerprint dim (small for the test)
    feature_dim = 4         # e.g. HOMO, LUMO, Gap, dipole
    hidden_dim = 128        # module default

    key = jax.random.PRNGKey(0)
    k_params, k_noise = jax.random.split(key)

    params = init_params(k_params, noise_dim, fingerprint_dim, feature_dim, hidden_dim)
    prep = prepare_params(params, fingerprint_dim=fingerprint_dim, feature_dim=feature_dim)

    for batch in (200, 640):
        noise = jax.random.normal(
            jax.random.fold_in(k_noise, batch), (batch, noise_dim), jnp.float32)

        out = generator_forward(
            noise, prep, fingerprint_dim=fingerprint_dim, feature_dim=feature_dim)
        jax.block_until_ready(out)

        ref = reference_forward(noise, params)
        assert out["fingerprint"].shape == (batch, fingerprint_dim)
        assert out["features"].shape == (batch, feature_dim)
        # bf16 matmul operands (f32 accumulation) -> loosened tolerance vs f32 ref.
        assert jnp.allclose(out["fingerprint"], ref["fingerprint"], atol=3e-2, rtol=3e-2)
        assert jnp.allclose(out["features"], ref["features"], atol=3e-2, rtol=3e-2)

    print("KERNEL_OK")
</pallas_src>

<mosaic_0001>
module attributes {stable_mosaic.version = 11 : i64} {
  func.func @generator_kernel(%arg0: i32, %arg1: memref<200x16xf32, #tpu.memory_space<vmem>>, %arg2: memref<16x128xbf16, #tpu.memory_space<vmem>>, %arg3: memref<1x128xf32, #tpu.memory_space<vmem>>, %arg4: memref<128x128xbf16, #tpu.memory_space<vmem>>, %arg5: memref<1x128xf32, #tpu.memory_space<vmem>>, %arg6: memref<128x128xbf16, #tpu.memory_space<vmem>>, %arg7: memref<1x128xf32, #tpu.memory_space<vmem>>, %arg8: memref<128x256xbf16, #tpu.memory_space<vmem>>, %arg9: memref<1x256xf32, #tpu.memory_space<vmem>>, %arg10: memref<200x256xf32, #tpu.memory_space<vmem>>) attributes {dimension_semantics = [#tpu.dimension_semantics<parallel>], iteration_bounds = array<i64: 1>, scalar_prefetch = 0 : i64, scratch_operands = 0 : i64, tpu.core_type = #tpu.core_type<tc>, window_params = [{transform_indices = @transform_0, window_bounds = array<i64: 200, 16>}, {pipeline_mode = #tpu.pipeline_mode<synchronous>, transform_indices = @transform_1, window_bounds = array<i64: 16, 128>}, {pipeline_mode = #tpu.pipeline_mode<synchronous>, transform_indices = @transform_2, window_bounds = array<i64: 1, 128>}, {pipeline_mode = #tpu.pipeline_mode<synchronous>, transform_indices = @transform_3, window_bounds = array<i64: 128, 128>}, {pipeline_mode = #tpu.pipeline_mode<synchronous>, transform_indices = @transform_4, window_bounds = array<i64: 1, 128>}, {pipeline_mode = #tpu.pipeline_mode<synchronous>, transform_indices = @transform_5, window_bounds = array<i64: 128, 128>}, {pipeline_mode = #tpu.pipeline_mode<synchronous>, transform_indices = @transform_6, window_bounds = array<i64: 1, 128>}, {pipeline_mode = #tpu.pipeline_mode<synchronous>, transform_indices = @transform_7, window_bounds = array<i64: 128, 256>}, {pipeline_mode = #tpu.pipeline_mode<synchronous>, transform_indices = @transform_8, window_bounds = array<i64: 1, 256>}, {transform_indices = @transform_9, window_bounds = array<i64: 200, 256>}]} {
    %c0 = arith.constant 0 : index
    %c0_0 = arith.constant 0 : index
    %0 = vector.load %arg1[%c0, %c0_0] : memref<200x16xf32, #tpu.memory_space<vmem>>, vector<200x16xf32>
    %1 = arith.truncf %0 : vector<200x16xf32> to vector<200x16xbf16>
    %c0_1 = arith.constant 0 : index
    %c0_2 = arith.constant 0 : index
    %2 = vector.load %arg2[%c0_1, %c0_2] : memref<16x128xbf16, #tpu.memory_space<vmem>>, vector<16x128xbf16>
    %cst = arith.constant dense<0.000000e+00> : vector<200x128xf32>
    %3 = tpu.matmul %1, %2, %cst {dimension_numbers = #tpu.dot_dimension_numbers<[1], [0], [0], [1], [0, 0, 1, 1], [], []>} : vector<200x16xbf16>, vector<16x128xbf16>, vector<200x128xf32> -> vector<200x128xf32>
    %c0_3 = arith.constant 0 : index
    %c0_4 = arith.constant 0 : index
    %4 = vector.load %arg3[%c0_3, %c0_4] : memref<1x128xf32, #tpu.memory_space<vmem>>, vector<1x128xf32>
    %5 = vector.broadcast %4 : vector<1x128xf32> to vector<200x128xf32>
    %6 = arith.addf %3, %5 : vector<200x128xf32>
    %cst_5 = arith.constant 0.000000e+00 : f32
    %7 = vector.broadcast %cst_5 : f32 to vector<200x128xf32>
    %8 = arith.maximumf %6, %7 : vector<200x128xf32>
    %9 = arith.truncf %8 : vector<200x128xf32> to vector<200x128xbf16>
    %c0_6 = arith.constant 0 : index
    %c0_7 = arith.constant 0 : index
    %10 = vector.load %arg4[%c0_6, %c0_7] : memref<128x128xbf16, #tpu.memory_space<vmem>>, vector<128x128xbf16>
    %cst_8 = arith.constant dense<0.000000e+00> : vector<200x128xf32>
    %11 = tpu.matmul %9, %10, %cst_8 {dimension_numbers = #tpu.dot_dimension_numbers<[1], [0], [0], [1], [0, 0, 1, 1], [], []>} : vector<200x128xbf16>, vector<128x128xbf16>, vector<200x128xf32> -> vector<200x128xf32>
    %c0_9 = arith.constant 0 : index
    %c0_10 = arith.constant 0 : index
    %12 = vector.load %arg5[%c0_9, %c0_10] : memref<1x128xf32, #tpu.memory_space<vmem>>, vector<1x128xf32>
    %13 = vector.broadcast %12 : vector<1x128xf32> to vector<200x128xf32>
    %14 = arith.addf %11, %13 : vector<200x128xf32>
    %cst_11 = arith.constant 0.000000e+00 : f32
    %15 = vector.broadcast %cst_11 : f32 to vector<200x128xf32>
    %16 = arith.maximumf %14, %15 : vector<200x128xf32>
    %17 = arith.truncf %16 : vector<200x128xf32> to vector<200x128xbf16>
    %c0_12 = arith.constant 0 : index
    %c0_13 = arith.constant 0 : index
    %18 = vector.load %arg6[%c0_12, %c0_13] : memref<128x128xbf16, #tpu.memory_space<vmem>>, vector<128x128xbf16>
    %cst_14 = arith.constant dense<0.000000e+00> : vector<200x128xf32>
    %19 = tpu.matmul %17, %18, %cst_14 {dimension_numbers = #tpu.dot_dimension_numbers<[1], [0], [0], [1], [0, 0, 1, 1], [], []>} : vector<200x128xbf16>, vector<128x128xbf16>, vector<200x128xf32> -> vector<200x128xf32>
    %c0_15 = arith.constant 0 : index
    %c0_16 = arith.constant 0 : index
    %20 = vector.load %arg7[%c0_15, %c0_16] : memref<1x128xf32, #tpu.memory_space<vmem>>, vector<1x128xf32>
    %21 = vector.broadcast %20 : vector<1x128xf32> to vector<200x128xf32>
    %22 = arith.addf %19, %21 : vector<200x128xf32>
    %cst_17 = arith.constant 0.000000e+00 : f32
    %23 = vector.broadcast %cst_17 : f32 to vector<200x128xf32>
    %24 = arith.maximumf %22, %23 : vector<200x128xf32>
    %25 = arith.truncf %24 : vector<200x128xf32> to vector<200x128xbf16>
    %c0_18 = arith.constant 0 : index
    %c0_19 = arith.constant 0 : index
    %26 = vector.load %arg8[%c0_18, %c0_19] : memref<128x256xbf16, #tpu.memory_space<vmem>>, vector<128x256xbf16>
    %cst_20 = arith.constant dense<0.000000e+00> : vector<200x256xf32>
    %27 = tpu.matmul %25, %26, %cst_20 {dimension_numbers = #tpu.dot_dimension_numbers<[1], [0], [0], [1], [0, 0, 1, 1], [], []>} : vector<200x128xbf16>, vector<128x256xbf16>, vector<200x256xf32> -> vector<200x256xf32>
    %c0_21 = arith.constant 0 : index
    %c0_22 = arith.constant 0 : index
    %28 = vector.load %arg9[%c0_21, %c0_22] : memref<1x256xf32, #tpu.memory_space<vmem>>, vector<1x256xf32>
    %29 = vector.broadcast %28 : vector<1x256xf32> to vector<200x256xf32>
    %30 = arith.addf %27, %29 : vector<200x256xf32>
    %31 = math.tanh %30 : vector<200x256xf32>
    %c0_23 = arith.constant 0 : index
    %c0_24 = arith.constant 0 : index
    %32 = vector.load %arg10[%c0_23, %c0_24] : memref<200x256xf32, #tpu.memory_space<vmem>>, vector<200x256xf32>
    tpu.vector_store %arg10[%c0_23, %c0_24], %31 {strides = array<i32>} : memref<200x256xf32, #tpu.memory_space<vmem>>, vector<200x256xf32>,
    return
  }
  func.func @transform_0(%arg0: i32) -> (i32, i32) {
    %c0_i32 = arith.constant 0 : i32
    %c0_i32_0 = arith.constant 0 : i32
    return %arg0, %c0_i32 : i32, i32
  }
  func.func @transform_1(%arg0: i32) -> (i32, i32) {
    %c0_i32 = arith.constant 0 : i32
    %c0_i32_0 = arith.constant 0 : i32
    %c0_i32_1 = arith.constant 0 : i32
    return %c0_i32, %c0_i32_0 : i32, i32
  }
  func.func @transform_2(%arg0: i32) -> (i32, i32) {
    %c0_i32 = arith.constant 0 : i32
    %c0_i32_0 = arith.constant 0 : i32
    %c0_i32_1 = arith.constant 0 : i32
    return %c0_i32, %c0_i32_0 : i32, i32
  }
  func.func @transform_3(%arg0: i32) -> (i32, i32) {
    %c0_i32 = arith.constant 0 : i32
    %c0_i32_0 = arith.constant 0 : i32
    %c0_i32_1 = arith.constant 0 : i32
    return %c0_i32, %c0_i32_0 : i32, i32
  }
  func.func @transform_4(%arg0: i32) -> (i32, i32) {
    %c0_i32 = arith.constant 0 : i32
    %c0_i32_0 = arith.constant 0 : i32
    %c0_i32_1 = arith.constant 0 : i32
    return %c0_i32, %c0_i32_0 : i32, i32
  }
  func.func @transform_5(%arg0: i32) -> (i32, i32) {
    %c0_i32 = arith.constant 0 : i32
    %c0_i32_0 = arith.constant 0 : i32
    %c0_i32_1 = arith.constant 0 : i32
    return %c0_i32, %c0_i32_0 : i32, i32
  }
  func.func @transform_6(%arg0: i32) -> (i32, i32) {
    %c0_i32 = arith.constant 0 : i32
    %c0_i32_0 = arith.constant 0 : i32
    %c0_i32_1 = arith.constant 0 : i32
    return %c0_i32, %c0_i32_0 : i32, i32
  }
  func.func @transform_7(%arg0: i32) -> (i32, i32) {
    %c0_i32 = arith.constant 0 : i32
    %c0_i32_0 = arith.constant 0 : i32
    %c0_i32_1 = arith.constant 0 : i32
    return %c0_i32, %c0_i32_0 : i32, i32
  }
  func.func @transform_8(%arg0: i32) -> (i32, i32) {
    %c0_i32 = arith.constant 0 : i32
    %c0_i32_0 = arith.constant 0 : i32
    %c0_i32_1 = arith.constant 0 : i32
    return %c0_i32, %c0_i32_0 : i32, i32
  }
  func.func @transform_9(%arg0: i32) -> (i32, i32) {
    %c0_i32 = arith.constant 0 : i32
    %c0_i32_0 = arith.constant 0 : i32
    return %arg0, %c0_i32 : i32, i32
  }
}

</mosaic_0001>

<llo_original>
// kernel: generator_forward.1
$region0: #{generator_forward.1}
  #allocation0 [shape = 'u32[]', space=smem, size = 0x4, offset = 0x4, fixed_abs, tag = 'smem constant byte address 0x4 - core index']
  #allocation1 [shape = 'u32[144,128]{1,0:T(1,128)}', space=vmem, size = 0x12000, scoped, tag = 'internal scratch']
  %s0 = inlined_call_operand.vmem [shape: f32[200,16], index: 0, kind: input, shape index: {}]
  %s1 = inlined_call_operand.vmem [shape: bf16[16,128], index: 1, kind: input, shape index: {}]
  %s2 = inlined_call_operand.vmem [shape: f32[1,128], index: 2, kind: input, shape index: {}]
  %s3 = inlined_call_operand.vmem [shape: bf16[128,128], index: 3, kind: input, shape index: {}]
  %s4 = inlined_call_operand.vmem [shape: f32[1,128], index: 4, kind: input, shape index: {}]
  %s5 = inlined_call_operand.hbm [shape: bf16[128,128], index: 5, kind: input, shape index: {}]
  %s6 = inlined_call_operand.vmem [shape: f32[1,128], index: 6, kind: input, shape index: {}]
  %s7 = inlined_call_operand.vmem [shape: bf16[128,256], index: 7, kind: input, shape index: {}]
  %s8 = inlined_call_operand.vmem [shape: f32[1,256], index: 8, kind: input, shape index: {}]
  %s9 = inlined_call_operand.vmem [shape: f32[200,256], index: 9, kind: output, shape index: {}]
  %s10 = sld [smem:[#allocation0]]
  $region50: #{generator_forward.1} parent=0
    _
  %s12 = ssub.s32 1, %s10
  %s13 = scalar_select 0, %s12, %s10
  $region1: #{generator_forward.1} parent=0
    #allocation2 [shape = 'u8[32768]{0}', space=vmem, size = 0x8000, scoped, tag = 'input window, operand 5, single buffered']
    #allocation3 [shape = 's32[1]{0}', space=sflag, size = 0x4, scoped, tag = 'scoped memory for generator_forward.1']
    %14 = vsyncpa [#allocation3], 0
    // Predicated region
    $region2: #{generator_forward.1} parent=1 // pred_check
      _
    $region3: #{generator_forward.1} parent=1 // pred_check_branch
      %16 = sbr.rel (0) target = $region5
    $region4: #{generator_forward.1} parent=1 // pred_region
      _
    $region5: #{generator_forward.1} parent=1 // pred_fallthru
      _
    // Predicated region
    $region6: #{generator_forward.1} parent=1 // pred_check
      _
    $region7: #{generator_forward.1} parent=1 // pred_check_branch
      %18 = sbr.rel (0) target = $region9
    $region8: #{generator_forward.1} parent=1 // pred_region
      _
    $region9: #{generator_forward.1} parent=1 // pred_fallthru
      _
    // Predicated region
    $region10: #{generator_forward.1} parent=1 // pred_check
      _
    $region11: #{generator_forward.1} parent=1 // pred_check_branch
      %20 = sbr.rel (0) target = $region13
    $region12: #{generator_forward.1} parent=1 // pred_region
      _
    $region13: #{generator_forward.1} parent=1 // pred_fallthru
      _
    // Predicated region
    $region14: #{generator_forward.1} parent=1 // pred_check
      _
    $region15: #{generator_forward.1} parent=1 // pred_check_branch
      %22 = sbr.rel (0) target = $region17
    $region16: #{generator_forward.1} parent=1 // pred_region
      _
    $region17: #{generator_forward.1} parent=1 // pred_fallthru
      _
    // Predicated region
    $region18: #{generator_forward.1} parent=1 // pred_check
      _
    $region19: #{generator_forward.1} parent=1 // pred_check_branch
      %24 = sbr.rel (0) target = $region21
    $region20: #{generator_forward.1} parent=1 // pred_region
      _
    $region21: #{generator_forward.1} parent=1 // pred_fallthru
      _
    // Predicated region
    $region22: #{generator_forward.1} parent=1 // pred_check
      _
    $region23: #{generator_forward.1} parent=1 // pred_check_branch
      %26 = sbr.rel (0) target = $region25
    $region24: #{generator_forward.1} parent=1 // pred_region
      %s28 = ssub.s32 1024, 1024
      %29 = vsyncadd [#allocation3], %s28
      %s30 = sshll.u32 [#allocation2], 4
      %s31 = int_to_ptr.vmem [resolvable:$true] %s30
      %36 = dma.hbm_to_vmem [thread:$0]  %s5, 1024, %s31, [#allocation3], 64, 64, 4
    $region25: #{generator_forward.1} parent=1 // pred_fallthru
      _
    // Predicated region
    $region26: #{generator_forward.1} parent=1 // pred_check
      _
    $region27: #{generator_forward.1} parent=1 // pred_check_branch
      %38 = sbr.rel (0) target = $region29
    $region28: #{generator_forward.1} parent=1 // pred_region
      _
    $region29: #{generator_forward.1} parent=1 // pred_fallthru
      _
    // Predicated region
    $region30: #{generator_forward.1} parent=1 // pred_check
      _
    $region31: #{generator_forward.1} parent=1 // pred_check_branch
      %40 = sbr.rel (0) target = $region33
    $region32: #{generator_forward.1} parent=1 // pred_region
      _
    $region33: #{generator_forward.1} parent=1 // pred_fallthru
      _
    // Predicated region
    $region34: #{generator_forward.1} parent=1 // pred_check
      _
    $region35: #{generator_forward.1} parent=1 // pred_check_branch
      %42 = sbr.rel (0) target = $region37
    $region36: #{generator_forward.1} parent=1 // pred_region
      _
    $region37: #{generator_forward.1} parent=1 // pred_fallthru
      _
    // Predicated region
    $region38: #{generator_forward.1} parent=1 // pred_check
      _
    $region39: #{generator_forward.1} parent=1 // pred_check_branch
      %44 = sbr.rel (0) target = $region41
    $region40: #{generator_forward.1} parent=1 // pred_region
      %45 = dma.done [#allocation3], 1024
    $region41: #{generator_forward.1} parent=1 // pred_fallthru
      _
    %v47 = vld [vmem:[%s0] sm:$0xff]
    %v48 = vld [vmem:[%s0 + $0x8] sm:$0xff]
    %v49 = vld [vmem:[%s0 + $0x10] sm:$0xff]
    %v50 = vld [vmem:[%s0 + $0x18] sm:$0xff]
    %v51 = vld [vmem:[%s0 + $0x20] sm:$0xff]
    %v52 = vld [vmem:[%s0 + $0x28] sm:$0xff]
    %v53 = vld [vmem:[%s0 + $0x30] sm:$0xff]
    %v54 = vld [vmem:[%s0 + $0x38] sm:$0xff]
    %v55 = vld [vmem:[%s0 + $0x40] sm:$0xff]
    %v56 = vld [vmem:[%s0 + $0x48] sm:$0xff]
    %v57 = vld [vmem:[%s0 + $0x50] sm:$0xff]
    %v58 = vld [vmem:[%s0 + $0x58] sm:$0xff]
    %v59 = vld [vmem:[%s0 + $0x60] sm:$0xff]
    %v60 = vld [vmem:[%s0 + $0x68] sm:$0xff]
    %v61 = vld [vmem:[%s0 + $0x70] sm:$0xff]
    %v62 = vld [vmem:[%s0 + $0x78] sm:$0xff]
    %v63 = vld [vmem:[%s0 + $0x80] sm:$0xff]
    %v64 = vld [vmem:[%s0 + $0x88] sm:$0xff]
    %v65 = vld [vmem:[%s0 + $0x90] sm:$0xff]
    %v66 = vld [vmem:[%s0 + $0x98] sm:$0xff]
    %v67 = vld [vmem:[%s0 + $0xa0] sm:$0xff]
    %v68 = vld [vmem:[%s0 + $0xa8] sm:$0xff]
    %v69 = vld [vmem:[%s0 + $0xb0] sm:$0xff]
    %v70 = vld [vmem:[%s0 + $0xb8] sm:$0xff]
    %v71 = vld [vmem:[%s0 + $0xc0] sm:$0xff]
    %v72 = vpack.c.bf16 %v48, %v47
    %v73 = vpack.c.bf16 %v50, %v49
    %v74 = vpack.c.bf16 %v52, %v51
    %v75 = vpack.c.bf16 %v54, %v53
    %v76 = vpack.c.bf16 %v56, %v55
    %v77 = vpack.c.bf16 %v58, %v57
    %v78 = vpack.c.bf16 %v60, %v59
    %v79 = vpack.c.bf16 %v62, %v61
    %v80 = vpack.c.bf16 %v64, %v63
    %v81 = vpack.c.bf16 %v66, %v65
    %v82 = vpack.c.bf16 %v68, %v67
    %v83 = vpack.c.bf16 %v70, %v69
    %v84 = vpack.c.bf16 %v71, %v71
    %v85 = vld [vmem:[%s1] sm:$0xf]
    %v86 = vld [vmem:[%s1 + $0x4] sm:$0xf]
    %v87 = vld [vmem:[%s2] sm:$0x1]
    %v89 = vlaneseq
    %v90 = vshrl.u32 %v89, 7
    %v91 = vsub.s32 0, %v90
    %v92 = vrot.slane %v87, %v91
    %v96 = vunpack.c.l.b16 %v85
    %v97 = vunpack.c.l.b16 %v86
    %v98 = vpack.c.b16 %v97, %v96
    %vm100 = vcmask 130048
    %v102 = vsel %vm100, %v72, 0
    %v105 = vsel %vm100, %v73, 0
    %v108 = vsel %vm100, %v74, 0
    %v111 = vsel %vm100, %v75, 0
    %v114 = vsel %vm100, %v76, 0
    %v117 = vsel %vm100, %v77, 0
    %v120 = vsel %vm100, %v78, 0
    %v123 = vsel %vm100, %v79, 0
    %v126 = vsel %vm100, %v80, 0
    %v129 = vsel %vm100, %v81, 0
    %v132 = vsel %vm100, %v82, 0
    %v135 = vsel %vm100, %v83, 0
    %v138 = vsel %vm100, %v84, 0
    %140 = vmatprep.subr.bf16.mxu0 0
    %141 = vmatpush1.bf16.msra.mxu0 %v98
    %142 = vmatprep.subr.bf16.mxu0 0
    %143 = vmatpush1.bf16.msra.mxu0 0
    %144 = vmatprep.subr.bf16.mxu0 0
    %145 = vmatpush1.bf16.msra.mxu0 0
    %146 = vmatprep.subr.bf16.mxu0 0
    %147 = vmatpush1.bf16.msra.mxu0 0
    %148 = vmatprep.subr.bf16.mxu0 0
    %149 = vmatpush1.bf16.msra.mxu0 0
    %150 = vmatprep.subr.bf16.mxu0 0
    %151 = vmatpush1.bf16.msra.mxu0 0
    %152 = vmatprep.subr.bf16.mxu0 0
    %153 = vmatpush1.bf16.msra.mxu0 0
    %154 = vmatprep.subr.bf16.mxu0 0
    %155 = vmatpush1.bf16.msra.mxu0 0
    %156 = vmatprep.subr.bf16.mxu0 0
    %157 = vmatpush1.bf16.msra.mxu0 0
    %158 = vmatprep.subr.bf16.mxu0 0
    %159 = vmatpush1.bf16.msra.mxu0 0
    %160 = vmatprep.subr.bf16.mxu0 0
    %161 = vmatpush1.bf16.msra.mxu0 0
    %162 = vmatprep.subr.bf16.mxu0 0
    %163 = vmatpush1.bf16.msra.mxu0 0
    %164 = vmatprep.subr.bf16.mxu0 0
    %165 = vmatpush1.bf16.msra.mxu0 0
    %166 = vmatprep.subr.bf16.mxu0 0
    %167 = vmatpush1.bf16.msra.mxu0 0
    %168 = vmatprep.subr.bf16.mxu0 0
    %169 = vmatpush1.bf16.msra.mxu0 0
    %170 = vmatprep.subr.bf16.mxu0 0
    %171 = vmatpush1.bf16.msra.mxu0 0
    %172 = vmatprep.mubr.bf16.mxu0 0
    %173 = vmatmul.mubr.bf16.gmra.mrb[0].mxu0 %v102
    %v174 = vpop.f32.mrb[0].mxu0
    %v175 = vadd.f32 %v92, %v174
    %v176 = vpop.f32.mrb[0].mxu0
    %v177 = vpop.f32.mrb[0].mxu0
    %v178 = vadd.f32 %v92, %v177
    %v179 = vpop.f32.mrb[0].mxu0
    %180 = vmatprep.mubr.bf16.mxu0 0
    %181 = vmatmul.mubr.bf16.gmra.mrb[0].mxu0 %v105
    %v182 = vpop.f32.mrb[0].mxu0
    %v183 = vadd.f32 %v92, %v182
    %v184 = vpop.f32.mrb[0].mxu0
    %v185 = vpop.f32.mrb[0].mxu0
    %v186 = vadd.f32 %v92, %v185
    %v187 = vpop.f32.mrb[0].mxu0
    %188 = vmatprep.mubr.bf16.mxu0 0
    %189 = vmatmul.mubr.bf16.gmra.mrb[0].mxu0 %v108
    %v190 = vpop.f32.mrb[0].mxu0
    %v191 = vadd.f32 %v92, %v190
    %v192 = vpop.f32.mrb[0].mxu0
    %v193 = vpop.f32.mrb[0].mxu0
    %v194 = vadd.f32 %v92, %v193
    %v195 = vpop.f32.mrb[0].mxu0
    %196 = vmatprep.mubr.bf16.mxu0 0
    %197 = vmatmul.mubr.bf16.gmra.mrb[0].mxu0 %v111
    %v198 = vpop.f32.mrb[0].mxu0
    %v199 = vadd.f32 %v92, %v198
    %v200 = vpop.f32.mrb[0].mxu0
    %v201 = vpop.f32.mrb[0].mxu0
    %v202 = vadd.f32 %v92, %v201
    %v203 = vpop.f32.mrb[0].mxu0
    %204 = vmatprep.mubr.bf16.mxu0 0
    %205 = vmatmul.mubr.bf16.gmra.mrb[0].mxu0 %v114
    %v206 = vpop.f32.mrb[0].mxu0
    %v207 = vadd.f32 %v92, %v206
    %v208 = vpop.f32.mrb[0].mxu0
    %v209 = vpop.f32.mrb[0].mxu0
    %v210 = vadd.f32 %v92, %v209
    %v211 = vpop.f32.mrb[0].mxu0
    %212 = vmatprep.mubr.bf16.mxu0 0
    %213 = vmatmul.mubr.bf16.gmra.mrb[0].mxu0 %v117
    %v214 = vpop.f32.mrb[0].mxu0
    %v215 = vadd.f32 %v92, %v214
    %v216 = vpop.f32.mrb[0].mxu0
    %v217 = vpop.f32.mrb[0].mxu0
    %v218 = vadd.f32 %v92, %v217
    %v219 = vpop.f32.mrb[0].mxu0
    %220 = vmatprep.mubr.bf16.mxu0 0
    %221 = vmatmul.mubr.bf16.gmra.mrb[0].mxu0 %v120
    %v222 = vpop.f32.mrb[0].mxu0
    %v223 = vadd.f32 %v92, %v222
    %v224 = vpop.f32.mrb[0].mxu0
    %v225 = vpop.f32.mrb[0].mxu0
    %v226 = vadd.f32 %v92, %v225
    %v227 = vpop.f32.mrb[0].mxu0
    %228 = vmatprep.mubr.bf16.mxu0 0
    %229 = vmatmul.mubr.bf16.gmra.mrb[0].mxu0 %v123
    %v230 = vpop.f32.mrb[0].mxu0
    %v231 = vadd.f32 %v92, %v230
    %v232 = vpop.f32.mrb[0].mxu0
    %v233 = vpop.f32.mrb[0].mxu0
    %v234 = vadd.f32 %v92, %v233
    %v235 = vpop.f32.mrb[0].mxu0
    %236 = vmatprep.mubr.bf16.mxu0 0
    %237 = vmatmul.mubr.bf16.gmra.mrb[0].mxu0 %v126
    %v238 = vpop.f32.mrb[0].mxu0
    %v239 = vadd.f32 %v92, %v238
    %v240 = vpop.f32.mrb[0].mxu0
    %v241 = vpop.f32.mrb[0].mxu0
    %v242 = vadd.f32 %v92, %v241
    %v243 = vpop.f32.mrb[0].mxu0
    %244 = vmatprep.mubr.bf16.mxu0 0
    %245 = vmatmul.mubr.bf16.gmra.mrb[0].mxu0 %v129
    %v246 = vpop.f32.mrb[0].mxu0
    %v247 = vadd.f32 %v92, %v246
    %v248 = vpop.f32.mrb[0].mxu0
    %v249 = vpop.f32.mrb[0].mxu0
    %v250 = vadd.f32 %v92, %v249
    %v251 = vpop.f32.mrb[0].mxu0
    %252 = vmatprep.mubr.bf16.mxu0 0
    %253 = vmatmul.mubr.bf16.gmra.mrb[0].mxu0 %v132
    %v254 = vpop.f32.mrb[0].mxu0
    %v255 = vadd.f32 %v92, %v254
    %v256 = vpop.f32.mrb[0].mxu0
    %v257 = vpop.f32.mrb[0].mxu0
    %v258 = vadd.f32 %v92, %v257
    %v259 = vpop.f32.mrb[0].mxu0
    %260 = vmatprep.mubr.bf16.mxu0 0
    %261 = vmatmul.mubr.bf16.gmra.mrb[0].mxu0 %v135
    %v262 = vpop.f32.mrb[0].mxu0
    %v263 = vadd.f32 %v92, %v262
    %v264 = vpop.f32.mrb[0].mxu0
    %v265 = vpop.f32.mrb[0].mxu0
    %v266 = vadd.f32 %v92, %v265
    %v267 = vpop.f32.mrb[0].mxu0
    %268 = vmatprep.mubr.bf16.mxu0 0
    %269 = vmatmul.mubr.bf16.gmra.mrb[0].mxu0 %v138
    %v270 = vpop.f32.mrb[0].mxu0
    %v271 = vadd.f32 %v92, %v270
    %v272 = vpop.f32.mrb[0].mxu0
    %v273 = vpop.f32.mrb[0].mxu0
    %v274 = vpop.f32.mrb[0].mxu0
    %275 = vdwg.mxu0
    %v276 = vmax.f32 %v175, 0.0
    %v277 = vmax.f32 %v178, 0.0
    %v278 = vmax.f32 %v183, 0.0
    %v279 = vmax.f32 %v186, 0.0
    %v280 = vmax.f32 %v191, 0.0
    %v281 = vmax.f32 %v194, 0.0
    %v282 = vmax.f32 %v199, 0.0
    %v283 = vmax.f32 %v202, 0.0
    %v284 = vmax.f32 %v207, 0.0
    %v285 = vmax.f32 %v210, 0.0
    %v286 = vmax.f32 %v215, 0.0
    %v287 = vmax.f32 %v218, 0.0
    %v288 = vmax.f32 %v223, 0.0
    %v289 = vmax.f32 %v226, 0.0
    %v290 = vmax.f32 %v231, 0.0
    %v291 = vmax.f32 %v234, 0.0
    %v292 = vmax.f32 %v239, 0.0
    %v293 = vmax.f32 %v242, 0.0
    %v294 = vmax.f32 %v247, 0.0
    %v295 = vmax.f32 %v250, 0.0
    %v296 = vmax.f32 %v255, 0.0
    %v297 = vmax.f32 %v258, 0.0
    %v298 = vmax.f32 %v263, 0.0
    %v299 = vmax.f32 %v266, 0.0
    %v300 = vmax.f32 %v271, 0.0
    %v301 = vpack.c.bf16 %v277, %v276
    %v302 = vpack.c.bf16 %v279, %v278
    %v303 = vpack.c.bf16 %v281, %v280
    %v304 = vpack.c.bf16 %v283, %v282
    %v305 = vpack.c.bf16 %v285, %v284
    %v306 = vpack.c.bf16 %v287, %v286
    %v307 = vpack.c.bf16 %v289, %v288
    %v308 = vpack.c.bf16 %v291, %v290
    %v309 = vpack.c.bf16 %v293, %v292
    %v310 = vpack.c.bf16 %v295, %v294
    %v311 = vpack.c.bf16 %v297, %v296
    %v312 = vpack.c.bf16 %v299, %v298
    %v313 = vpack.c.bf16 %v300, %v300
    %v314 = vld [vmem:[%s3] sm:$0xf]
    %v315 = vld [vmem:[%s3 + $0x4] sm:$0xf]
    %v316 = vld [vmem:[%s3 + $0x8] sm:$0xf]
    %v317 = vld [vmem:[%s3 + $0xc] sm:$0xf]
    %v318 = vld [vmem:[%s3 + $0x10] sm:$0xf]
    %v319 = vld [vmem:[%s3 + $0x14] sm:$0xf]
    %v320 = vld [vmem:[%s3 + $0x18] sm:$0xf]
    %v321 = vld [vmem:[%s3 + $0x1c] sm:$0xf]
    %v322 = vld [vmem:[%s3 + $0x20] sm:$0xf]
    %v323 = vld [vmem:[%s3 + $0x24] sm:$0xf]
    %v324 = vld [vmem:[%s3 + $0x28] sm:$0xf]
    %v325 = vld [vmem:[%s3 + $0x2c] sm:$0xf]
    %v326 = vld [vmem:[%s3 + $0x30] sm:$0xf]
    %v327 = vld [vmem:[%s3 + $0x34] sm:$0xf]
    %v328 = vld [vmem:[%s3 + $0x38] sm:$0xf]
    %v329 = vld [vmem:[%s3 + $0x3c] sm:$0xf]
    %v330 = vld [vmem:[%s4] sm:$0x1]
    %v332 = vlaneseq
    %v333 = vshrl.u32 %v332, 7
    %v334 = vsub.s32 0, %v333
    %v335 = vrot.slane %v330, %v334
    %v353 = vunpack.c.l.b16 %v314
    %v354 = vunpack.c.l.b16 %v315
    %v355 = vunpack.c.l.b16 %v316
    %v356 = vunpack.c.l.b16 %v317
    %v357 = vunpack.c.l.b16 %v318
    %v358 = vunpack.c.l.b16 %v319
    %v359 = vunpack.c.l.b16 %v320
    %v360 = vunpack.c.l.b16 %v321
    %v361 = vunpack.c.l.b16 %v322
    %v362 = vunpack.c.l.b16 %v323
    %v363 = vunpack.c.l.b16 %v324
    %v364 = vunpack.c.l.b16 %v325
    %v365 = vunpack.c.l.b16 %v326
    %v366 = vunpack.c.l.b16 %v327
    %v367 = vunpack.c.l.b16 %v328
    %v368 = vunpack.c.l.b16 %v329
    %v369 = vpack.c.b16 %v354, %v353
    %v370 = vpack.c.b16 %v356, %v355
    %v371 = vpack.c.b16 %v358, %v357
    %v372 = vpack.c.b16 %v360, %v359
    %v373 = vpack.c.b16 %v362, %v361
    %v374 = vpack.c.b16 %v364, %v363
    %v375 = vpack.c.b16 %v366, %v365
    %v376 = vpack.c.b16 %v368, %v367
    %385 = vmatprep.subr.bf16.mxu0 0
    %386 = vmatpush1.bf16.msra.mxu0 %v369
    %387 = vmatprep.subr.bf16.mxu0 0
    %388 = vmatpush1.bf16.msra.mxu0 %v370
    %389 = vmatprep.subr.bf16.mxu0 0
    %390 = vmatpush1.bf16.msra.mxu0 %v371
    %391 = vmatprep.subr.bf16.mxu0 0
    %392 = vmatpush1.bf16.msra.mxu0 %v372
    %393 = vmatprep.subr.bf16.mxu0 0
    %394 = vmatpush1.bf16.msra.mxu0 %v373
    %395 = vmatprep.subr.bf16.mxu0 0
    %396 = vmatpush1.bf16.msra.mxu0 %v374
    %397 = vmatprep.subr.bf16.mxu0 0
    %398 = vmatpush1.bf16.msra.mxu0 %v375
    %399 = vmatprep.subr.bf16.mxu0 0
    %400 = vmatpush1.bf16.msra.mxu0 %v376
    %401 = vmatprep.subr.bf16.mxu0 0
    %402 = vmatpush1.bf16.msra.mxu0 0
    %403 = vmatprep.subr.bf16.mxu0 0
    %404 = vmatpush1.bf16.msra.mxu0 0
    %405 = vmatprep.subr.bf16.mxu0 0
    %406 = vmatpush1.bf16.msra.mxu0 0
    %407 = vmatprep.subr.bf16.mxu0 0
    %408 = vmatpush1.bf16.msra.mxu0 0
    %409 = vmatprep.subr.bf16.mxu0 0
    %410 = vmatpush1.bf16.msra.mxu0 0
    %411 = vmatprep.subr.bf16.mxu0 0
    %412 = vmatpush1.bf16.msra.mxu0 0
    %413 = vmatprep.subr.bf16.mxu0 0
    %414 = vmatpush1.bf16.msra.mxu0 0
    %415 = vmatprep.subr.bf16.mxu0 0
    %416 = vmatpush1.bf16.msra.mxu0 0
    %417 = vmatprep.mubr.bf16.mxu0 0
    %418 = vmatmul.mubr.bf16.gmra.mrb[0].mxu0 %v301
    %v419 = vpop.f32.mrb[0].mxu0
    %v420 = vadd.f32 %v335, %v419
    %v421 = vpop.f32.mrb[0].mxu0
    %v422 = vpop.f32.mrb[0].mxu0
    %v423 = vadd.f32 %v335, %v422
    %v424 = vpop.f32.mrb[0].mxu0
    %425 = vmatprep.mubr.bf16.mxu0 0
    %426 = vmatmul.mubr.bf16.gmra.mrb[0].mxu0 %v302
    %v427 = vpop.f32.mrb[0].mxu0
    %v428 = vadd.f32 %v335, %v427
    %v429 = vpop.f32.mrb[0].mxu0
    %v430 = vpop.f32.mrb[0].mxu0
    %v431 = vadd.f32 %v335, %v430
    %v432 = vpop.f32.mrb[0].mxu0
    %433 = vmatprep.mubr.bf16.mxu0 0
    %434 = vmatmul.mubr.bf16.gmra.mrb[0].mxu0 %v303
    %v435 = vpop.f32.mrb[0].mxu0
    %v436 = vadd.f32 %v335, %v435
    %v437 = vpop.f32.mrb[0].mxu0
    %v438 = vpop.f32.mrb[0].mxu0
    %v439 = vadd.f32 %v335, %v438
    %v440 = vpop.f32.mrb[0].mxu0
    %441 = vmatprep.mubr.bf16.mxu0 0
    %442 = vmatmul.mubr.bf16.gmra.mrb[0].mxu0 %v304
    %v443 = vpop.f32.mrb[0].mxu0
    %v444 = vadd.f32 %v335, %v443
    %v445 = vpop.f32.mrb[0].mxu0
    %v446 = vpop.f32.mrb[0].mxu0
    %v447 = vadd.f32 %v335, %v446
    %v448 = vpop.f32.mrb[0].mxu0
    %449 = vmatprep.mubr.bf16.mxu0 0
    %450 = vmatmul.mubr.bf16.gmra.mrb[0].mxu0 %v305
    %v451 = vpop.f32.mrb[0].mxu0
    %v452 = vadd.f32 %v335, %v451
    %v453 = vpop.f32.mrb[0].mxu0
    %v454 = vpop.f32.mrb[0].mxu0
    %v455 = vadd.f32 %v335, %v454
    %v456 = vpop.f32.mrb[0].mxu0
    %457 = vmatprep.mubr.bf16.mxu0 0
    %458 = vmatmul.mubr.bf16.gmra.mrb[0].mxu0 %v306
    %v459 = vpop.f32.mrb[0].mxu0
    %v460 = vadd.f32 %v335, %v459
    %v461 = vpop.f32.mrb[0].mxu0
    %v462 = vpop.f32.mrb[0].mxu0
    %v463 = vadd.f32 %v335, %v462
    %v464 = vpop.f32.mrb[0].mxu0
    %465 = vmatprep.mubr.bf16.mxu0 0
    %466 = vmatmul.mubr.bf16.gmra.mrb[0].mxu0 %v307
    %v467 = vpop.f32.mrb[0].mxu0
    %v468 = vadd.f32 %v335, %v467
    %v469 = vpop.f32.mrb[0].mxu0
    %v470 = vpop.f32.mrb[0].mxu0
    %v471 = vadd.f32 %v335, %v470
    %v472 = vpop.f32.mrb[0].mxu0
    %473 = vmatprep.mubr.bf16.mxu0 0
    %474 = vmatmul.mubr.bf16.gmra.mrb[0].mxu0 %v308
    %v475 = vpop.f32.mrb[0].mxu0
    %v476 = vadd.f32 %v335, %v475
    %v477 = vpop.f32.mrb[0].mxu0
    %v478 = vpop.f32.mrb[0].mxu0
    %v479 = vadd.f32 %v335, %v478
    %v480 = vpop.f32.mrb[0].mxu0
    %481 = vmatprep.mubr.bf16.mxu0 0
    %482 = vmatmul.mubr.bf16.gmra.mrb[0].mxu0 %v309
    %v483 = vpop.f32.mrb[0].mxu0
    %v484 = vadd.f32 %v335, %v483
    %v485 = vpop.f32.mrb[0].mxu0
    %v486 = vpop.f32.mrb[0].mxu0
    %v487 = vadd.f32 %v335, %v486
    %v488 = vpop.f32.mrb[0].mxu0
    %489 = vmatprep.mubr.bf16.mxu0 0
    %490 = vmatmul.mubr.bf16.gmra.mrb[0].mxu0 %v310
    %v491 = vpop.f32.mrb[0].mxu0
    %v492 = vadd.f32 %v335, %v491
    %v493 = vpop.f32.mrb[0].mxu0
    %v494 = vpop.f32.mrb[0].mxu0
    %v495 = vadd.f32 %v335, %v494
    %v496 = vpop.f32.mrb[0].mxu0
    %497 = vmatprep.mubr.bf16.mxu0 0
    %498 = vmatmul.mubr.bf16.gmra.mrb[0].mxu0 %v311
    %v499 = vpop.f32.mrb[0].mxu0
    %v500 = vadd.f32 %v335, %v499
    %v501 = vpop.f32.mrb[0].mxu0
    %v502 = vpop.f32.mrb[0].mxu0
    %v503 = vadd.f32 %v335, %v502
    %v504 = vpop.f32.mrb[0].mxu0
    %505 = vmatprep.mubr.bf16.mxu0 0
    %506 = vmatmul.mubr.bf16.gmra.mrb[0].mxu0 %v312
    %v507 = vpop.f32.mrb[0].mxu0
    %v508 = vadd.f32 %v335, %v507
    %v509 = vpop.f32.mrb[0].mxu0
    %v510 = vpop.f32.mrb[0].mxu0
    %v511 = vadd.f32 %v335, %v510
    %v512 = vpop.f32.mrb[0].mxu0
    %513 = vmatprep.mubr.bf16.mxu0 0
    %514 = vmatmul.mubr.bf16.gmra.mrb[0].mxu0 %v313
    %v515 = vpop.f32.mrb[0].mxu0
    %v516 = vadd.f32 %v335, %v515
    %v517 = vpop.f32.mrb[0].mxu0
    %v518 = vpop.f32.mrb[0].mxu0
    %v519 = vpop.f32.mrb[0].mxu0
    %520 = vdwg.mxu0
    %v521 = vmax.f32 %v420, 0.0
    %v522 = vmax.f32 %v423, 0.0
    %v523 = vmax.f32 %v428, 0.0
    %v524 = vmax.f32 %v431, 0.0
    %v525 = vmax.f32 %v436, 0.0
    %v526 = vmax.f32 %v439, 0.0
    %v527 = vmax.f32 %v444, 0.0
    %v528 = vmax.f32 %v447, 0.0
    %v529 = vmax.f32 %v452, 0.0
    %v530 = vmax.f32 %v455, 0.0
    %v531 = vmax.f32 %v460, 0.0
    %v532 = vmax.f32 %v463, 0.0
    %v533 = vmax.f32 %v468, 0.0
    %v534 = vmax.f32 %v471, 0.0
    %v535 = vmax.f32 %v476, 0.0
    %v536 = vmax.f32 %v479, 0.0
    %v537 = vmax.f32 %v484, 0.0
    %v538 = vmax.f32 %v487, 0.0
    %v539 = vmax.f32 %v492, 0.0
    %v540 = vmax.f32 %v495, 0.0
    %v541 = vmax.f32 %v500, 0.0
    %v542 = vmax.f32 %v503, 0.0
    %v543 = vmax.f32 %v508, 0.0
    %v544 = vmax.f32 %v511, 0.0
    %v545 = vmax.f32 %v516, 0.0
    %v546 = vpack.c.bf16 %v522, %v521
    %v547 = vpack.c.bf16 %v524, %v523
    %v548 = vpack.c.bf16 %v526, %v525
    %v549 = vpack.c.bf16 %v528, %v527
    %v550 = vpack.c.bf16 %v530, %v529
    %v551 = vpack.c.bf16 %v532, %v531
    %v552 = vpack.c.bf16 %v534, %v533
    %v553 = vpack.c.bf16 %v536, %v535
    %v554 = vpack.c.bf16 %v538, %v537
    %v555 = vpack.c.bf16 %v540, %v539
    %v556 = vpack.c.bf16 %v542, %v541
    %v557 = vpack.c.bf16 %v544, %v543
    %v558 = vpack.c.bf16 %v545, %v545
    %v559 = vld [vmem:[#allocation2] sm:$0xf]
    %v560 = vld [vmem:[#allocation2 + $0x4] sm:$0xf]
    %v561 = vld [vmem:[#allocation2 + $0x8] sm:$0xf]
    %v562 = vld [vmem:[#allocation2 + $0xc] sm:$0xf]
    %v563 = vld [vmem:[#allocation2 + $0x10] sm:$0xf]
    %v564 = vld [vmem:[#allocation2 + $0x14] sm:$0xf]
    %v565 = vld [vmem:[#allocation2 + $0x18] sm:$0xf]
    %v566 = vld [vmem:[#allocation2 + $0x1c] sm:$0xf]
    %v567 = vld [vmem:[#allocation2 + $0x20] sm:$0xf]
    %v568 = vld [vmem:[#allocation2 + $0x24] sm:$0xf]
    %v569 = vld [vmem:[#allocation2 + $0x28] sm:$0xf]
    %v570 = vld [vmem:[#allocation2 + $0x2c] sm:$0xf]
    %v571 = vld [vmem:[#allocation2 + $0x30] sm:$0xf]
    %v572 = vld [vmem:[#allocation2 + $0x34] sm:$0xf]
    %v573 = vld [vmem:[#allocation2 + $0x38] sm:$0xf]
    %v574 = vld [vmem:[#allocation2 + $0x3c] sm:$0xf]
    %v575 = vld [vmem:[%s6] sm:$0x1]
    %v577 = vlaneseq
    %v578 = vshrl.u32 %v577, 7
    %v579 = vsub.s32 0, %v578
    %v580 = vrot.slane %v575, %v579
    %v598 = vunpack.c.l.b16 %v559
    %v599 = vunpack.c.l.b16 %v560
    %v600 = vunpack.c.l.b16 %v561
    %v601 = vunpack.c.l.b16 %v562
    %v602 = vunpack.c.l.b16 %v563
    %v603 = vunpack.c.l.b16 %v564
    %v604 = vunpack.c.l.b16 %v565
    %v605 = vunpack.c.l.b16 %v566
    %v606 = vunpack.c.l.b16 %v567
    %v607 = vunpack.c.l.b16 %v568
    %v608 = vunpack.c.l.b16 %v569
    %v609 = vunpack.c.l.b16 %v570
    %v610 = vunpack.c.l.b16 %v571
    %v611 = vunpack.c.l.b16 %v572
    %v612 = vunpack.c.l.b16 %v573
    %v613 = vunpack.c.l.b16 %v574
    %v614 = vpack.c.b16 %v599, %v598
    %v615 = vpack.c.b16 %v601, %v600
    %v616 = vpack.c.b16 %v603, %v602
    %v617 = vpack.c.b16 %v605, %v604
    %v618 = vpack.c.b16 %v607, %v606
    %v619 = vpack.c.b16 %v609, %v608
    %v620 = vpack.c.b16 %v611, %v610
    %v621 = vpack.c.b16 %v613, %v612
    %630 = vmatprep.subr.bf16.mxu0 0
    %631 = vmatpush1.bf16.msra.mxu0 %v614
    %632 = vmatprep.subr.bf16.mxu0 0
    %633 = vmatpush1.bf16.msra.mxu0 %v615
    %634 = vmatprep.subr.bf16.mxu0 0
    %635 = vmatpush1.bf16.msra.mxu0 %v616
    %636 = vmatprep.subr.bf16.mxu0 0
    %637 = vmatpush1.bf16.msra.mxu0 %v617
    %638 = vmatprep.subr.bf16.mxu0 0
    %639 = vmatpush1.bf16.msra.mxu0 %v618
    %640 = vmatprep.subr.bf16.mxu0 0
    %641 = vmatpush1.bf16.msra.mxu0 %v619
    %642 = vmatprep.subr.bf16.mxu0 0
    %643 = vmatpush1.bf16.msra.mxu0 %v620
    %644 = vmatprep.subr.bf16.mxu0 0
    %645 = vmatpush1.bf16.msra.mxu0 %v621
    %646 = vmatprep.subr.bf16.mxu0 0
    %647 = vmatpush1.bf16.msra.mxu0 0
    %648 = vmatprep.subr.bf16.mxu0 0
    %649 = vmatpush1.bf16.msra.mxu0 0
    %650 = vmatprep.subr.bf16.mxu0 0
    %651 = vmatpush1.bf16.msra.mxu0 0
    %652 = vmatprep.subr.bf16.mxu0 0
    %653 = vmatpush1.bf16.msra.mxu0 0
    %654 = vmatprep.subr.bf16.mxu0 0
    %655 = vmatpush1.bf16.msra.mxu0 0
    %656 = vmatprep.subr.bf16.mxu0 0
    %657 = vmatpush1.bf16.msra.mxu0 0
    %658 = vmatprep.subr.bf16.mxu0 0
    %659 = vmatpush1.bf16.msra.mxu0 0
    %660 = vmatprep.subr.bf16.mxu0 0
    %661 = vmatpush1.bf16.msra.mxu0 0
    %662 = vmatprep.mubr.bf16.mxu0 0
    %663 = vmatmul.mubr.bf16.gmra.mrb[0].mxu0 %v546
    %v664 = vpop.f32.mrb[0].mxu0
    %v665 = vadd.f32 %v580, %v664
    %v666 = vpop.f32.mrb[0].mxu0
    %v667 = vpop.f32.mrb[0].mxu0
    %v668 = vadd.f32 %v580, %v667
    %v669 = vpop.f32.mrb[0].mxu0
    %670 = vmatprep.mubr.bf16.mxu0 0
    %671 = vmatmul.mubr.bf16.gmra.mrb[0].mxu0 %v547
    %v672 = vpop.f32.mrb[0].mxu0
    %v673 = vadd.f32 %v580, %v672
    %v674 = vpop.f32.mrb[0].mxu0
    %v675 = vpop.f32.mrb[0].mxu0
    %v676 = vadd.f32 %v580, %v675
    %v677 = vpop.f32.mrb[0].mxu0
    %678 = vmatprep.mubr.bf16.mxu0 0
    %679 = vmatmul.mubr.bf16.gmra.mrb[0].mxu0 %v548
    %v680 = vpop.f32.mrb[0].mxu0
    %v681 = vadd.f32 %v580, %v680
    %v682 = vpop.f32.mrb[0].mxu0
    %v683 = vpop.f32.mrb[0].mxu0
    %v684 = vadd.f32 %v580, %v683
    %v685 = vpop.f32.mrb[0].mxu0
    %686 = vmatprep.mubr.bf16.mxu0 0
    %687 = vmatmul.mubr.bf16.gmra.mrb[0].mxu0 %v549
    %v688 = vpop.f32.mrb[0].mxu0
    %v689 = vadd.f32 %v580, %v688
    %v690 = vpop.f32.mrb[0].mxu0
    %v691 = vpop.f32.mrb[0].mxu0
    %v692 = vadd.f32 %v580, %v691
    %v693 = vpop.f32.mrb[0].mxu0
    %694 = vmatprep.mubr.bf16.mxu0 0
    %695 = vmatmul.mubr.bf16.gmra.mrb[0].mxu0 %v550
    %v696 = vpop.f32.mrb[0].mxu0
    %v697 = vadd.f32 %v580, %v696
    %v698 = vpop.f32.mrb[0].mxu0
    %v699 = vpop.f32.mrb[0].mxu0
    %v700 = vadd.f32 %v580, %v699
    %v701 = vpop.f32.mrb[0].mxu0
    %702 = vmatprep.mubr.bf16.mxu0 0
    %703 = vmatmul.mubr.bf16.gmra.mrb[0].mxu0 %v551
    %v704 = vpop.f32.mrb[0].mxu0
    %v705 = vadd.f32 %v580, %v704
    %v706 = vpop.f32.mrb[0].mxu0
    %v707 = vpop.f32.mrb[0].mxu0
    %v708 = vadd.f32 %v580, %v707
    %v709 = vpop.f32.mrb[0].mxu0
    %710 = vmatprep.mubr.bf16.mxu0 0
    %711 = vmatmul.mubr.bf16.gmra.mrb[0].mxu0 %v552
    %v712 = vpop.f32.mrb[0].mxu0
    %v713 = vadd.f32 %v580, %v712
    %v714 = vpop.f32.mrb[0].mxu0
    %v715 = vpop.f32.mrb[0].mxu0
    %v716 = vadd.f32 %v580, %v715
    %v717 = vpop.f32.mrb[0].mxu0
    %718 = vmatprep.mubr.bf16.mxu0 0
    %719 = vmatmul.mubr.bf16.gmra.mrb[0].mxu0 %v553
    %v720 = vpop.f32.mrb[0].mxu0
    %v721 = vadd.f32 %v580, %v720
    %v722 = vpop.f32.mrb[0].mxu0
    %v723 = vpop.f32.mrb[0].mxu0
    %v724 = vadd.f32 %v580, %v723
    %v725 = vpop.f32.mrb[0].mxu0
    %726 = vmatprep.mubr.bf16.mxu0 0
    %727 = vmatmul.mubr.bf16.gmra.mrb[0].mxu0 %v554
    %v728 = vpop.f32.mrb[0].mxu0
    %v729 = vadd.f32 %v580, %v728
    %v730 = vpop.f32.mrb[0].mxu0
    %v731 = vpop.f32.mrb[0].mxu0
    %v732 = vadd.f32 %v580, %v731
    %v733 = vpop.f32.mrb[0].mxu0
    %734 = vmatprep.mubr.bf16.mxu0 0
    %735 = vmatmul.mubr.bf16.gmra.mrb[0].mxu0 %v555
    %v736 = vpop.f32.mrb[0].mxu0
    %v737 = vadd.f32 %v580, %v736
    %v738 = vpop.f32.mrb[0].mxu0
    %v739 = vpop.f32.mrb[0].mxu0
    %v740 = vadd.f32 %v580, %v739
    %v741 = vpop.f32.mrb[0].mxu0
    %742 = vmatprep.mubr.bf16.mxu0 0
    %743 = vmatmul.mubr.bf16.gmra.mrb[0].mxu0 %v556
    %v744 = vpop.f32.mrb[0].mxu0
    %v745 = vadd.f32 %v580, %v744
    %v746 = vpop.f32.mrb[0].mxu0
    %v747 = vpop.f32.mrb[0].mxu0
    %v748 = vadd.f32 %v580, %v747
    %v749 = vpop.f32.mrb[0].mxu0
    %750 = vmatprep.mubr.bf16.mxu0 0
    %751 = vmatmul.mubr.bf16.gmra.mrb[0].mxu0 %v557
    %v752 = vpop.f32.mrb[0].mxu0
    %v753 = vadd.f32 %v580, %v752
    %v754 = vpop.f32.mrb[0].mxu0
    %v755 = vpop.f32.mrb[0].mxu0
    %v756 = vadd.f32 %v580, %v755
    %v757 = vpop.f32.mrb[0].mxu0
    %758 = vmatprep.mubr.bf16.mxu0 0
    %759 = vmatmul.mubr.bf16.gmra.mrb[0].mxu0 %v558
    %v760 = vpop.f32.mrb[0].mxu0
    %v761 = vadd.f32 %v580, %v760
    %v762 = vpop.f32.mrb[0].mxu0
    %v763 = vpop.f32.mrb[0].mxu0
    %v764 = vpop.f32.mrb[0].mxu0
    %765 = vdwg.mxu0
    %v766 = vmax.f32 %v665, 0.0
    %v767 = vmax.f32 %v668, 0.0
    %v768 = vmax.f32 %v673, 0.0
    %v769 = vmax.f32 %v676, 0.0
    %v770 = vmax.f32 %v681, 0.0
    %v771 = vmax.f32 %v684, 0.0
    %v772 = vmax.f32 %v689, 0.0
    %v773 = vmax.f32 %v692, 0.0
    %v774 = vmax.f32 %v697, 0.0
    %v775 = vmax.f32 %v700, 0.0
    %v776 = vmax.f32 %v705, 0.0
    %v777 = vmax.f32 %v708, 0.0
    %v778 = vmax.f32 %v713, 0.0
    %v779 = vmax.f32 %v716, 0.0
    %v780 = vmax.f32 %v721, 0.0
    %v781 = vmax.f32 %v724, 0.0
    %v782 = vmax.f32 %v729, 0.0
    %v783 = vmax.f32 %v732, 0.0
    %v784 = vmax.f32 %v737, 0.0
    %v785 = vmax.f32 %v740, 0.0
    %v786 = vmax.f32 %v745, 0.0
    %v787 = vmax.f32 %v748, 0.0
    %v788 = vmax.f32 %v753, 0.0
    %v789 = vmax.f32 %v756, 0.0
    %v790 = vmax.f32 %v761, 0.0
    %v791 = vpack.c.bf16 %v767, %v766
    %v792 = vpack.c.bf16 %v769, %v768
    %v793 = vpack.c.bf16 %v771, %v770
    %v794 = vpack.c.bf16 %v773, %v772
    %v795 = vpack.c.bf16 %v775, %v774
    %v796 = vpack.c.bf16 %v777, %v776
    %v797 = vpack.c.bf16 %v779, %v778
    %v798 = vpack.c.bf16 %v781, %v780
    %v799 = vpack.c.bf16 %v783, %v782
    %v800 = vpack.c.bf16 %v785, %v784
    %v801 = vpack.c.bf16 %v787, %v786
    %v802 = vpack.c.bf16 %v789, %v788
    %v803 = vpack.c.bf16 %v790, %v790
    %v804 = vld [vmem:[%s7] sm:$0xff]
    %v805 = vld [vmem:[%s7 + $0x8] sm:$0xff]
    %v806 = vld [vmem:[%s7 + $0x10] sm:$0xff]
    %v807 = vld [vmem:[%s7 + $0x18] sm:$0xff]
    %v808 = vld [vmem:[%s7 + $0x20] sm:$0xff]
    %v809 = vld [vmem:[%s7 + $0x28] sm:$0xff]
    %v810 = vld [vmem:[%s7 + $0x30] sm:$0xff]
    %v811 = vld [vmem:[%s7 + $0x38] sm:$0xff]
    %v812 = vld [vmem:[%s7 + $0x40] sm:$0xff]
    %v813 = vld [vmem:[%s7 + $0x48] sm:$0xff]
    %v814 = vld [vmem:[%s7 + $0x50] sm:$0xff]
    %v815 = vld [vmem:[%s7 + $0x58] sm:$0xff]
    %v816 = vld [vmem:[%s7 + $0x60] sm:$0xff]
    %v817 = vld [vmem:[%s7 + $0x68] sm:$0xff]
    %v818 = vld [vmem:[%s7 + $0x70] sm:$0xff]
    %v819 = vld [vmem:[%s7 + $0x78] sm:$0xff]
    %v820 = vld [vmem:[%s8] sm:$0x3]
    %v822 = vlaneseq
    %v823 = vshrl.u32 %v822, 7
    %v824 = vsub.s32 0, %v823
    %v825 = vrot.slane %v820, %v824
    %v826 = vlaneseq
    %v827 = vshrl.u32 %v826, 7
    %v828 = vsub.s32 1, %v827
    %v829 = vrot.slane %v820, %v828
    %v848 = vunpack.c.l.b16 %v804
    %v849 = vunpack.c.h.b16 %v804
    %v850 = vunpack.c.l.b16 %v805
    %v851 = vunpack.c.h.b16 %v805
    %v852 = vunpack.c.l.b16 %v806
    %v853 = vunpack.c.h.b16 %v806
    %v854 = vunpack.c.l.b16 %v807
    %v855 = vunpack.c.h.b16 %v807
    %v856 = vunpack.c.l.b16 %v808
    %v857 = vunpack.c.h.b16 %v808
    %v858 = vunpack.c.l.b16 %v809
    %v859 = vunpack.c.h.b16 %v809
    %v860 = vunpack.c.l.b16 %v810
    %v861 = vunpack.c.h.b16 %v810
    %v862 = vunpack.c.l.b16 %v811
    %v863 = vunpack.c.h.b16 %v811
    %v864 = vunpack.c.l.b16 %v812
    %v865 = vunpack.c.h.b16 %v812
    %v866 = vunpack.c.l.b16 %v813
    %v867 = vunpack.c.h.b16 %v813
    %v868 = vunpack.c.l.b16 %v814
    %v869 = vunpack.c.h.b16 %v814
    %v870 = vunpack.c.l.b16 %v815
    %v871 = vunpack.c.h.b16 %v815
    %v872 = vunpack.c.l.b16 %v816
    %v873 = vunpack.c.h.b16 %v816
    %v874 = vunpack.c.l.b16 %v817
    %v875 = vunpack.c.h.b16 %v817
    %v876 = vunpack.c.l.b16 %v818
    %v877 = vunpack.c.h.b16 %v818
    %v878 = vunpack.c.l.b16 %v819
    %v879 = vunpack.c.h.b16 %v819
    %v880 = vpack.c.b16 %v850, %v848
    %v881 = vpack.c.b16 %v851, %v849
    %v882 = vpack.c.b16 %v854, %v852
    %v883 = vpack.c.b16 %v855, %v853
    %v884 = vpack.c.b16 %v858, %v856
    %v885 = vpack.c.b16 %v859, %v857
    %v886 = vpack.c.b16 %v862, %v860
    %v887 = vpack.c.b16 %v863, %v861
    %v888 = vpack.c.b16 %v866, %v864
    %v889 = vpack.c.b16 %v867, %v865
    %v890 = vpack.c.b16 %v870, %v868
    %v891 = vpack.c.b16 %v871, %v869
    %v892 = vpack.c.b16 %v874, %v872
    %v893 = vpack.c.b16 %v875, %v873
    %v894 = vpack.c.b16 %v878, %v876
    %v895 = vpack.c.b16 %v879, %v877
    %912 = vmatprep.subr.bf16.mxu0 %v881
    %913 = vmatpush1.bf16.msra.mxu0 %v880
    %914 = vmatprep.subr.bf16.mxu0 %v883
    %915 = vmatpush1.bf16.msra.mxu0 %v882
    %916 = vmatprep.subr.bf16.mxu0 %v885
    %917 = vmatpush1.bf16.msra.mxu0 %v884
    %918 = vmatprep.subr.bf16.mxu0 %v887
    %919 = vmatpush1.bf16.msra.mxu0 %v886
    %920 = vmatprep.subr.bf16.mxu0 %v889
    %921 = vmatpush1.bf16.msra.mxu0 %v888
    %922 = vmatprep.subr.bf16.mxu0 %v891
    %923 = vmatpush1.bf16.msra.mxu0 %v890
    %924 = vmatprep.subr.bf16.mxu0 %v893
    %925 = vmatpush1.bf16.msra.mxu0 %v892
    %926 = vmatprep.subr.bf16.mxu0 %v895
    %927 = vmatpush1.bf16.msra.mxu0 %v894
    %928 = vmatprep.subr.bf16.mxu0 0
    %929 = vmatpush1.bf16.msra.mxu0 0
    %930 = vmatprep.subr.bf16.mxu0 0
    %931 = vmatpush1.bf16.msra.mxu0 0
    %932 = vmatprep.subr.bf16.mxu0 0
    %933 = vmatpush1.bf16.msra.mxu0 0
    %934 = vmatprep.subr.bf16.mxu0 0
    %935 = vmatpush1.bf16.msra.mxu0 0
    %936 = vmatprep.subr.bf16.mxu0 0
    %937 = vmatpush1.bf16.msra.mxu0 0
    %938 = vmatprep.subr.bf16.mxu0 0
    %939 = vmatpush1.bf16.msra.mxu0 0
    %940 = vmatprep.subr.bf16.mxu0 0
    %941 = vmatpush1.bf16.msra.mxu0 0
    %942 = vmatprep.subr.bf16.mxu0 0
    %943 = vmatpush1.bf16.msra.mxu0 0
    %944 = vmatprep.mubr.bf16.mxu0 0
    %945 = vmatmul.mubr.bf16.gmra.mrb[0].mxu0 %v791
    %v946 = vpop.f32.mrb[0].mxu0
    %v947 = vadd.f32 %v825, %v946
    %v948 = vpop.f32.mrb[0].mxu0
    %v949 = vadd.f32 %v829, %v948
    %v950 = vpop.f32.mrb[0].mxu0
    %v951 = vadd.f32 %v825, %v950
    %v952 = vpop.f32.mrb[0].mxu0
    %v953 = vadd.f32 %v829, %v952
    %954 = vmatprep.mubr.bf16.mxu0 0
    %955 = vmatmul.mubr.bf16.gmra.mrb[0].mxu0 %v792
    %v956 = vpop.f32.mrb[0].mxu0
    %v957 = vadd.f32 %v825, %v956
    %v958 = vpop.f32.mrb[0].mxu0
    %v959 = vadd.f32 %v829, %v958
    %v960 = vpop.f32.mrb[0].mxu0
    %v961 = vadd.f32 %v825, %v960
    %v962 = vpop.f32.mrb[0].mxu0
    %v963 = vadd.f32 %v829, %v962
    %964 = vmatprep.mubr.bf16.mxu0 0
    %965 = vmatmul.mubr.bf16.gmra.mrb[0].mxu0 %v793
    %v966 = vpop.f32.mrb[0].mxu0
    %v967 = vadd.f32 %v825, %v966
    %v968 = vpop.f32.mrb[0].mxu0
    %v969 = vadd.f32 %v829, %v968
    %v970 = vpop.f32.mrb[0].mxu0
    %v971 = vadd.f32 %v825, %v970
    %v972 = vpop.f32.mrb[0].mxu0
    %v973 = vadd.f32 %v829, %v972
    %974 = vmatprep.mubr.bf16.mxu0 0
    %975 = vmatmul.mubr.bf16.gmra.mrb[0].mxu0 %v794
    %v976 = vpop.f32.mrb[0].mxu0
    %v977 = vadd.f32 %v825, %v976
    %v978 = vpop.f32.mrb[0].mxu0
    %v979 = vadd.f32 %v829, %v978
    %v980 = vpop.f32.mrb[0].mxu0
    %v981 = vadd.f32 %v825, %v980
    %v982 = vpop.f32.mrb[0].mxu0
    %v983 = vadd.f32 %v829, %v982
    %984 = vmatprep.mubr.bf16.mxu0 0
    %985 = vmatmul.mubr.bf16.gmra.mrb[0].mxu0 %v795
    %v986 = vpop.f32.mrb[0].mxu0
    %v987 = vadd.f32 %v825, %v986
    %v988 = vpop.f32.mrb[0].mxu0
    %v989 = vadd.f32 %v829, %v988
    %v990 = vpop.f32.mrb[0].mxu0
    %v991 = vadd.f32 %v825, %v990
    %v992 = vpop.f32.mrb[0].mxu0
    %v993 = vadd.f32 %v829, %v992
    %994 = vmatprep.mubr.bf16.mxu0 0
    %995 = vmatmul.mubr.bf16.gmra.mrb[0].mxu0 %v796
    %v996 = vpop.f32.mrb[0].mxu0
    %v997 = vadd.f32 %v825, %v996
    %v998 = vpop.f32.mrb[0].mxu0
    %v999 = vadd.f32 %v829, %v998
    %v1000 = vpop.f32.mrb[0].mxu0
    %v1001 = vadd.f32 %v825, %v1000
    %v1002 = vpop.f32.mrb[0].mxu0
    %v1003 = vadd.f32 %v829, %v1002
    %1004 = vmatprep.mubr.bf16.mxu0 0
    %1005 = vmatmul.mubr.bf16.gmra.mrb[0].mxu0 %v797
    %v1006 = vpop.f32.mrb[0].mxu0
    %v1007 = vadd.f32 %v825, %v1006
    %v1008 = vpop.f32.mrb[0].mxu0
    %v1009 = vadd.f32 %v829, %v1008
    %v1010 = vpop.f32.mrb[0].mxu0
    %v1011 = vadd.f32 %v825, %v1010
    %v1012 = vpop.f32.mrb[0].mxu0
    %v1013 = vadd.f32 %v829, %v1012
    %1014 = vmatprep.mubr.bf16.mxu0 0
    %1015 = vmatmul.mubr.bf16.gmra.mrb[0].mxu0 %v798
    %v1016 = vpop.f32.mrb[0].mxu0
    %v1017 = vadd.f32 %v825, %v1016
    %v1018 = vpop.f32.mrb[0].mxu0
    %v1019 = vadd.f32 %v829, %v1018
    %v1020 = vpop.f32.mrb[0].mxu0
    %v1021 = vadd.f32 %v825, %v1020
    %v1022 = vpop.f32.mrb[0].mxu0
    %v1023 = vadd.f32 %v829, %v1022
    %1024 = vmatprep.mubr.bf16.mxu0 0
    %1025 = vmatmul.mubr.bf16.gmra.mrb[0].mxu0 %v799
    %v1026 = vpop.f32.mrb[0].mxu0
    %v1027 = vadd.f32 %v825, %v1026
    %v1028 = vpop.f32.mrb[0].mxu0
    %v1029 = vadd.f32 %v829, %v1028
    %v1030 = vpop.f32.mrb[0].mxu0
    %v1031 = vadd.f32 %v825, %v1030
    %v1032 = vpop.f32.mrb[0].mxu0
    %v1033 = vadd.f32 %v829, %v1032
    %1034 = vmatprep.mubr.bf16.mxu0 0
    %1035 = vmatmul.mubr.bf16.gmra.mrb[0].mxu0 %v800
    %v1036 = vpop.f32.mrb[0].mxu0
    %v1037 = vadd.f32 %v825, %v1036
    %v1038 = vpop.f32.mrb[0].mxu0
    %v1039 = vadd.f32 %v829, %v1038
    %v1040 = vpop.f32.mrb[0].mxu0
    %v1041 = vadd.f32 %v825, %v1040
    %v1042 = vpop.f32.mrb[0].mxu0
    %v1043 = vadd.f32 %v829, %v1042
    %1044 = vmatprep.mubr.bf16.mxu0 0
    %1045 = vmatmul.mubr.bf16.gmra.mrb[0].mxu0 %v801
    %v1046 = vpop.f32.mrb[0].mxu0
    %v1047 = vadd.f32 %v825, %v1046
    %v1048 = vpop.f32.mrb[0].mxu0
    %v1049 = vadd.f32 %v829, %v1048
    %v1050 = vpop.f32.mrb[0].mxu0
    %v1051 = vadd.f32 %v825, %v1050
    %v1052 = vpop.f32.mrb[0].mxu0
    %v1053 = vadd.f32 %v829, %v1052
    %1054 = vmatprep.mubr.bf16.mxu0 0
    %1055 = vmatmul.mubr.bf16.gmra.mrb[0].mxu0 %v802
    %v1056 = vpop.f32.mrb[0].mxu0
    %v1057 = vadd.f32 %v825, %v1056
    %v1058 = vpop.f32.mrb[0].mxu0
    %v1059 = vadd.f32 %v829, %v1058
    %v1060 = vpop.f32.mrb[0].mxu0
    %v1061 = vadd.f32 %v825, %v1060
    %v1062 = vpop.f32.mrb[0].mxu0
    %v1063 = vadd.f32 %v829, %v1062
    %1064 = vmatprep.mubr.bf16.mxu0 0
    %1065 = vmatmul.mubr.bf16.gmra.mrb[0].mxu0 %v803
    %v1066 = vpop.f32.mrb[0].mxu0
    %v1067 = vadd.f32 %v825, %v1066
    %v1068 = vpop.f32.mrb[0].mxu0
    %v1069 = vadd.f32 %v829, %v1068
    %v1070 = vpop.f32.mrb[0].mxu0
    %v1071 = vpop.f32.mrb[0].mxu0
    %1072 = vdwg.mxu0
    %v1073 = vtanh.pop %v947
    %v1074 = vtanh.pop %v949
    %v1075 = vtanh.pop %v951
    %v1076 = vtanh.pop %v953
    %v1077 = vtanh.pop %v957
    %v1078 = vtanh.pop %v959
    %v1079 = vtanh.pop %v961
    %v1080 = vtanh.pop %v963
    %v1081 = vtanh.pop %v967
    %v1082 = vtanh.pop %v969
    %v1083 = vtanh.pop %v971
    %v1084 = vtanh.pop %v973
    %v1085 = vtanh.pop %v977
    %v1086 = vtanh.pop %v979
    %v1087 = vtanh.pop %v981
    %v1088 = vtanh.pop %v983
    %v1089 = vtanh.pop %v987
    %v1090 = vtanh.pop %v989
    %v1091 = vtanh.pop %v991
    %v1092 = vtanh.pop %v993
    %v1093 = vtanh.pop %v997
    %v1094 = vtanh.pop %v999
    %v1095 = vtanh.pop %v1001
    %v1096 = vtanh.pop %v1003
    %v1097 = vtanh.pop %v1007
    %v1098 = vtanh.pop %v1009
    %v1099 = vtanh.pop %v1011
    %v1100 = vtanh.pop %v1013
    %v1101 = vtanh.pop %v1017
    %v1102 = vtanh.pop %v1019
    %v1103 = vtanh.pop %v1021
    %v1104 = vtanh.pop %v1023
    %v1105 = vtanh.pop %v1027
    %v1106 = vtanh.pop %v1029
    %v1107 = vtanh.pop %v1031
    %v1108 = vtanh.pop %v1033
    %v1109 = vtanh.pop %v1037
    %v1110 = vtanh.pop %v1039
    %v1111 = vtanh.pop %v1041
    %v1112 = vtanh.pop %v1043
    %v1113 = vtanh.pop %v1047
    %v1114 = vtanh.pop %v1049
    %v1115 = vtanh.pop %v1051
    %v1116 = vtanh.pop %v1053
    %v1117 = vtanh.pop %v1057
    %v1118 = vtanh.pop %v1059
    %v1119 = vtanh.pop %v1061
    %v1120 = vtanh.pop %v1063
    %v1121 = vtanh.pop %v1067
    %v1122 = vtanh.pop %v1069
    %1123 = vst [vmem:[%s9] sm:$0xff] %v1073
    %1124 = vst [vmem:[%s9 + $0x8] sm:$0xff] %v1074
    %1125 = vst [vmem:[%s9 + $0x10] sm:$0xff] %v1075
    %1126 = vst [vmem:[%s9 + $0x18] sm:$0xff] %v1076
    %1127 = vst [vmem:[%s9 + $0x20] sm:$0xff] %v1077
    %1128 = vst [vmem:[%s9 + $0x28] sm:$0xff] %v1078
    %1129 = vst [vmem:[%s9 + $0x30] sm:$0xff] %v1079
    %1130 = vst [vmem:[%s9 + $0x38] sm:$0xff] %v1080
    %1131 = vst [vmem:[%s9 + $0x40] sm:$0xff] %v1081
    %1132 = vst [vmem:[%s9 + $0x48] sm:$0xff] %v1082
    %1133 = vst [vmem:[%s9 + $0x50] sm:$0xff] %v1083
    %1134 = vst [vmem:[%s9 + $0x58] sm:$0xff] %v1084
    %1135 = vst [vmem:[%s9 + $0x60] sm:$0xff] %v1085
    %1136 = vst [vmem:[%s9 + $0x68] sm:$0xff] %v1086
    %1137 = vst [vmem:[%s9 + $0x70] sm:$0xff] %v1087
    %1138 = vst [vmem:[%s9 + $0x78] sm:$0xff] %v1088
    %1139 = vst [vmem:[%s9 + $0x80] sm:$0xff] %v1089
    %1140 = vst [vmem:[%s9 + $0x88] sm:$0xff] %v1090
    %1141 = vst [vmem:[%s9 + $0x90] sm:$0xff] %v1091
    %1142 = vst [vmem:[%s9 + $0x98] sm:$0xff] %v1092
    %1143 = vst [vmem:[%s9 + $0xa0] sm:$0xff] %v1093
    %1144 = vst [vmem:[%s9 + $0xa8] sm:$0xff] %v1094
    %1145 = vst [vmem:[%s9 + $0xb0] sm:$0xff] %v1095
    %1146 = vst [vmem:[%s9 + $0xb8] sm:$0xff] %v1096
    %1147 = vst [vmem:[%s9 + $0xc0] sm:$0xff] %v1097
    %1148 = vst [vmem:[%s9 + $0xc8] sm:$0xff] %v1098
    %1149 = vst [vmem:[%s9 + $0xd0] sm:$0xff] %v1099
    %1150 = vst [vmem:[%s9 + $0xd8] sm:$0xff] %v1100
    %1151 = vst [vmem:[%s9 + $0xe0] sm:$0xff] %v1101
    %1152 = vst [vmem:[%s9 + $0xe8] sm:$0xff] %v1102
    %1153 = vst [vmem:[%s9 + $0xf0] sm:$0xff] %v1103
    %1154 = vst [vmem:[%s9 + $0xf8] sm:$0xff] %v1104
    %1155 = vst [vmem:[%s9 + $0x100] sm:$0xff] %v1105
    %1156 = vst [vmem:[%s9 + $0x108] sm:$0xff] %v1106
    %1157 = vst [vmem:[%s9 + $0x110] sm:$0xff] %v1107
    %1158 = vst [vmem:[%s9 + $0x118] sm:$0xff] %v1108
    %1159 = vst [vmem:[%s9 + $0x120] sm:$0xff] %v1109
    %1160 = vst [vmem:[%s9 + $0x128] sm:$0xff] %v1110
    %1161 = vst [vmem:[%s9 + $0x130] sm:$0xff] %v1111
    %1162 = vst [vmem:[%s9 + $0x138] sm:$0xff] %v1112
    %1163 = vst [vmem:[%s9 + $0x140] sm:$0xff] %v1113
    %1164 = vst [vmem:[%s9 + $0x148] sm:$0xff] %v1114
    %1165 = vst [vmem:[%s9 + $0x150] sm:$0xff] %v1115
    %1166 = vst [vmem:[%s9 + $0x158] sm:$0xff] %v1116
    %1167 = vst [vmem:[%s9 + $0x160] sm:$0xff] %v1117
    %1168 = vst [vmem:[%s9 + $0x168] sm:$0xff] %v1118
    %1169 = vst [vmem:[%s9 + $0x170] sm:$0xff] %v1119
    %1170 = vst [vmem:[%s9 + $0x178] sm:$0xff] %v1120
    %1171 = vst [vmem:[%s9 + $0x180] sm:$0xff] %v1121
    %1172 = vst [vmem:[%s9 + $0x188] sm:$0xff] %v1122
    // Predicated region
    $region42: #{generator_forward.1} parent=1 // pred_check
      _
    $region43: #{generator_forward.1} parent=1 // pred_check_branch
      %1174 = sbr.rel (0) target = $region45
    $region44: #{generator_forward.1} parent=1 // pred_region
      _
    $region45: #{generator_forward.1} parent=1 // pred_fallthru
      _
    // Predicated region
    $region46: #{generator_forward.1} parent=1 // pred_check
      _
    $region47: #{generator_forward.1} parent=1 // pred_check_branch
      %1176 = sbr.rel (0) target = $region49
    $region48: #{generator_forward.1} parent=1 // pred_region
      _
    $region49: #{generator_forward.1} parent=1 // pred_fallthru
      _
    %1177 = vsyncpa [#allocation3], 1

</llo_original>
